<compile_context>
chip_gen: v7x
topology: tpu7x:2x2x1
jax: 0.10.0
libtpu: 0.0.40
codegen_flags: <defaults>
</compile_context>

<pallas_src>
import functools

import jax
import jax.numpy as jnp
from jax.experimental import pallas as pl
from jax.experimental.pallas import tpu as pltpu


MXU_DTYPE = jnp.bfloat16          # matmul operand dtype (accumulation stays f32)

SAPP_CH = [3, 64, 64, 128, 128]   # SAPP: in_channel=3, mlp=[64, 64, 128, 128]
SAPP_RES = (False, True, False, True)
PN_CH = [3 + 128, 128, 128, 128, 128]   # PointNet: in_channel=131, mlp=[128]*4
PN_RES = (False, True, True, True)
K_NEIGHBOURS = 8                  # feature_region


# ----------------------------------------------------------------------------
# tiling helper
# ----------------------------------------------------------------------------
def _pick_tile(total, target, mult=8):
    """Largest multiple of `mult` (<= target) that evenly divides `total`.

    Falls back to `total` (full-dim block, always legal) if no such divisor
    exists, so the (8, 128) BlockSpec rule can never be violated and prime
    sizes never degenerate to tiny tiles.
    """
    if total <= target:
        return total
    t = min(target, total)
    t -= t % mult
    while t >= mult:
        if total % t == 0:
            return t
        t -= mult
    return total


# ----------------------------------------------------------------------------
# kernel 1: tiled pairwise squared distances
# ----------------------------------------------------------------------------
def _sqdist_kernel(xr_ref, xc_ref, o_ref):
    """One (tm, N) tile of |xi - xj|^2 for one batch element.

    xr_ref: (1, tm, 3) row tile (natural layout, tiny); xc_ref: (1, 3, N)
    channel-first full copy (lane-dense) so the C=3 contraction is 3 VPU FMAs
    instead of an MXU matmul.
    """
    xr = xr_ref[0]                                                    # (tm, 3)
    xc = xc_ref[0]                                                    # (3, N)
    gram = (xr[:, 0:1] * xc[0:1, :] + xr[:, 1:2] * xc[1:2, :]
            + xr[:, 2:3] * xc[2:3, :])                                # (tm, N)
    sq_r = jnp.sum(xr * xr, axis=-1, keepdims=True)                   # (tm, 1)
    sq_c = jnp.sum(xc * xc, axis=0, keepdims=True)                    # (1, N)
    # clamp: gram-based distances can go slightly negative from cancellation
    o_ref[0] = jnp.maximum(sq_r + sq_c - 2.0 * gram, 0.0)


def pairwise_sqdist(xyz):
    B, N, C = xyz.shape
    xyz_cf = jnp.transpose(xyz, (0, 2, 1))                            # (B, 3, N)
    # bound the (tm, N) f32 output tile to ~2 MiB so double-buffering stays far
    # below v7x's 32 MiB scoped-VMEM default even for large N
    tm_target = max(8, min(512, (2 * 1024 * 1024) // (4 * N)))
    tm = _pick_tile(N, tm_target, 8)
    return pl.pallas_call(
        _sqdist_kernel,
        out_shape=jax.ShapeDtypeStruct((B, N, N), jnp.float32),
        grid=(B, N // tm),
        in_specs=[
            pl.BlockSpec((1, tm, C), lambda b, t: (b, t, 0)),
            pl.BlockSpec((1, C, N), lambda b, t: (b, 0, 0)),
        ],
        out_specs=pl.BlockSpec((1, tm, N), lambda b, t: (b, t, 0)),
        compiler_params=pltpu.CompilerParams(
            dimension_semantics=("parallel", "parallel")),
    )(xyz, xyz_cf)


# ----------------------------------------------------------------------------
# kernel 2: fused SAPP + PointNet + output head
# ----------------------------------------------------------------------------
def _encoder_fused_kernel(pts_ref, *refs, k, sapp_res, pn_res):
    """Per (batch, row-tile): SAPP shared MLP -> K-max-pool -> PointNet shared MLP
    -> running global max over points; output head applied on the last row tile.

    pts_ref: (1, tile_n, 3 + 3*k) packed [xyz | rel coords, neighbour-major].
    Nothing narrower than the packed input ever moves over HBM; all 64/128-wide
    intermediates live in VMEM/vregs only.
    """
    (sw1_ref, sb1_ref, sw2_ref, sb2_ref, sw3_ref, sb3_ref, sw4_ref, sb4_ref,
     pw1x_ref, pw1f_ref, pb1_ref, pw2_ref, pb2_ref, pw3_ref, pb3_ref,
     pw4_ref, pb4_ref,
     hw1_ref, hb1_ref, hw2_ref, hb2_ref, hw3_ref, hb3_ref,
     o_ref, gmax_ref) = refs

    t = pl.program_id(1)

    @pl.when(t == 0)
    def _():
        gmax_ref[...] = jnp.full_like(gmax_ref, -jnp.inf)

    pts = pts_ref[0]                                                  # (tile_n, 27)
    tile_n = pts.shape[0]

    # ---- SAPP layer 1 (3 -> 64): tiny C=3 contraction as VPU FMAs per neighbour
    sw1 = sw1_ref[...]
    sb1 = sb1_ref[...]
    h_parts = []
    for kk in range(k):
        o = 3 + 3 * kk
        hk = (pts[:, o:o + 1] * sw1[0:1, :] + pts[:, o + 1:o + 2] * sw1[1:2, :]
              + pts[:, o + 2:o + 3] * sw1[2:3, :]) + sb1
        h_parts.append(jnp.maximum(hk, 0.0))
    # one (k*tile_n, 64) activation, rows ordered neighbour-major (k*tile_n + n)
    h = jnp.concatenate(h_parts, axis=0)

    # ---- SAPP layers 2-4: bf16 MXU matmuls, f32 bias/ReLU/residual on the VPU
    for w_ref, b_ref, use_res in ((sw2_ref, sb2_ref, sapp_res[1]),
                                  (sw3_ref, sb3_ref, sapp_res[2]),
                                  (sw4_ref, sb4_ref, sapp_res[3])):
        y = jnp.dot(h.astype(w_ref.dtype), w_ref[...],
                    preferred_element_type=jnp.float32) + b_ref[...]
        y = jnp.maximum(y, 0.0)
        if use_res:
            y = y + h
        h = y

    # ---- neighbourhood max-pool: max over the k row-blocks (pure VPU maxes)
    feat = h[0:tile_n]
    for kk in range(1, k):
        feat = jnp.maximum(feat, h[kk * tile_n:(kk + 1) * tile_n])    # (tile_n, 128)

    # ---- PointNet layer 1 (131 -> 128): MXU on the 128-wide feature part plus
    #      3 VPU FMAs for the xyz part (the 131-wide concat never materializes)
    pw1x = pw1x_ref[...]
    g = jnp.dot(feat.astype(pw1f_ref.dtype), pw1f_ref[...],
                preferred_element_type=jnp.float32)
    g = g + (pts[:, 0:1] * pw1x[0:1, :] + pts[:, 1:2] * pw1x[1:2, :]
             + pts[:, 2:3] * pw1x[2:3, :]) + pb1_ref[...]
    g = jnp.maximum(g, 0.0)

    for w_ref, b_ref, use_res in ((pw2_ref, pb2_ref, pn_res[1]),
                                  (pw3_ref, pb3_ref, pn_res[2]),
                                  (pw4_ref, pb4_ref, pn_res[3])):
        y = jnp.dot(g.astype(w_ref.dtype), w_ref[...],
                    preferred_element_type=jnp.float32) + b_ref[...]
        y = jnp.maximum(y, 0.0)
        if use_res:
            y = y + g
        g = y

    # ---- running global max over the point axis (VMEM scratch, per batch)
    gmax_ref[...] = jnp.maximum(gmax_ref[...], jnp.max(g, axis=0, keepdims=True))

    # ---- last row tile of this batch: 3-layer output head (Dropout == identity)
    @pl.when(t == pl.num_programs(1) - 1)
    def _():
        z = gmax_ref[...]                                             # (1, 128) f32
        z = jnp.maximum(jnp.dot(z.astype(hw1_ref.dtype), hw1_ref[...],
                                preferred_element_type=jnp.float32)
                        + hb1_ref[...], 0.0)
        z = jnp.maximum(jnp.dot(z.astype(hw2_ref.dtype), hw2_ref[...],
                                preferred_element_type=jnp.float32)
                        + hb2_ref[...], 0.0)
        z = jnp.dot(z.astype(hw3_ref.dtype), hw3_ref[...],
                    preferred_element_type=jnp.float32) + hb3_ref[...]
        o_ref[0] = z.astype(o_ref.dtype)


def encoder_fused(pts_packed, sapp_params, pn_params, head_params, *, k):
    """pts_packed: (B, N, 3 + 3k) packed [xyz | rel] -> (B, d) encoder output."""
    B, N, c_in = pts_packed.shape
    d_out = head_params[-1][0].shape[1]
    tile_n = _pick_tile(N, 512, 8)        # bounded: activations stay well below VMEM

    (sw1, sb1), (sw2, sb2), (sw3, sb3), (sw4, sb4) = sapp_params
    (pw1, pb1), (pw2, pb2), (pw3, pb3), (pw4, pb4) = pn_params
    (hw1, hb1), (hw2, hb2), (hw3, hb3) = head_params
    pw1x, pw1f = pw1[:3], pw1[3:]         # split the (131, 128) first-layer weight

    consts = [
        sw1, sb1.reshape(1, -1),                         # layer-1 stays f32 (VPU path)
        sw2.astype(MXU_DTYPE), sb2.reshape(1, -1),
        sw3.astype(MXU_DTYPE), sb3.reshape(1, -1),
        sw4.astype(MXU_DTYPE), sb4.reshape(1, -1),
        pw1x, pw1f.astype(MXU_DTYPE), pb1.reshape(1, -1),  # xyz part stays f32 (VPU)
        pw2.astype(MXU_DTYPE), pb2.reshape(1, -1),
        pw3.astype(MXU_DTYPE), pb3.reshape(1, -1),
        pw4.astype(MXU_DTYPE), pb4.reshape(1, -1),
        hw1.astype(MXU_DTYPE), hb1.reshape(1, -1),
        hw2.astype(MXU_DTYPE), hb2.reshape(1, -1),
        hw3.astype(MXU_DTYPE), hb3.reshape(1, -1),
    ]
    const_spec = lambda a: pl.BlockSpec(a.shape, lambda b, t: (0, 0))

    kernel = functools.partial(_encoder_fused_kernel, k=k,
                               sapp_res=SAPP_RES, pn_res=PN_RES)
    out = pl.pallas_call(
        kernel,
        out_shape=jax.ShapeDtypeStruct((B, 1, d_out), jnp.float32),
        grid=(B, N // tile_n),
        in_specs=[pl.BlockSpec((1, tile_n, c_in), lambda b, t: (b, t, 0))]
                + [const_spec(a) for a in consts],
        out_specs=pl.BlockSpec((1, 1, d_out), lambda b, t: (b, 0, 0)),
        scratch_shapes=[pltpu.VMEM((1, pw4.shape[1]), jnp.float32)],
        compiler_params=pltpu.CompilerParams(
            dimension_semantics=("parallel", "arbitrary"),
            vmem_limit_bytes=32 * 1024 * 1024),
    )(pts_packed, *consts)
    return out.reshape(B, d_out)


# ----------------------------------------------------------------------------
# parameters (deterministic synthetic init; shapes follow the module __init__)
# ----------------------------------------------------------------------------
def _dense_init(key, fan_in, fan_out):
    w = jax.random.normal(key, (fan_in, fan_out), jnp.float32) / jnp.sqrt(
        jnp.float32(fan_in))
    b = jnp.zeros((fan_out,), jnp.float32)
    return w, b


def init_params(key, d_out):
    keys = jax.random.split(key, 16)
    k = iter(keys)
    params = {"sapp": [], "pn": [], "out": []}
    for cin, cout in zip(SAPP_CH[:-1], SAPP_CH[1:]):
        params["sapp"].append(_dense_init(next(k), cin, cout))
    for cin, cout in zip(PN_CH[:-1], PN_CH[1:]):
        params["pn"].append(_dense_init(next(k), cin, cout))
    out_ch = [128, 128, 128, d_out]   # Linear(128,128), Linear(128,128), Linear(128,d)
    for cin, cout in zip(out_ch[:-1], out_ch[1:]):
        params["out"].append(_dense_init(next(k), cin, cout))
    return params


# ----------------------------------------------------------------------------
# Encoder forward
# ----------------------------------------------------------------------------
def encoder_forward(params, xyz, *, feature_region=K_NEIGHBOURS):
    """xyz: (B, N, 3) -> (B, d).  (PyTorch's transpose(1,2) only switches to
    channel-first for its 1x1 convs; channels-last is used throughout here.)"""
    B, N, _ = xyz.shape
    k = feature_region

    # --- SAPP grouping: kNN (sample_rate=1 -> every point is a centroid) ------
    dist = pairwise_sqdist(xyz)                               # (B, N, N)   [Pallas]
    # TODO(synk): top-k + neighbour gather stay in XLA (no clean Pallas equivalent);
    #             the next step would be a running per-row top-8 fused into the
    #             distance kernel so the (B, N, N) matrix never hits HBM.
    _, idx = jax.lax.top_k(-dist, k)                          # (B, N, K) nearest nbrs
    grouped = jax.vmap(lambda pts, ind: pts[ind])(xyz, idx)   # (B, N, K, 3)
    rel = grouped - xyz[:, :, None, :]                        # (B, N, K, 3)

    # lane-dense packing: one (B, N, 3 + 3K) array carrying [xyz | rel] so the
    # fused kernel's only big DMA is contiguous 108-byte rows (no 3->128 padding).
    pts_packed = jnp.concatenate([xyz, rel.reshape(B, N, 3 * k)], axis=-1)

    # --- fused SAPP + PointNet + global max + output head ----------------------
    return encoder_fused(pts_packed, params["sapp"], params["pn"],
                         params["out"], k=k)                  # (B, d)      [Pallas]


# ----------------------------------------------------------------------------
if __name__ == "__main__":
    B, N, D_OUT = 2, 64, 32                 # small shapes; args.d = 32
    key = jax.random.PRNGKey(0)
    kx, kp = jax.random.split(key)
    xyz = jax.random.normal(kx, (B, N, 3), dtype=jnp.float32)
    params = init_params(kp, D_OUT)

    out = jax.block_until_ready(encoder_forward(params, xyz))
    assert out.shape == (B, D_OUT) and out.dtype == jnp.float32
    assert bool(jnp.all(jnp.isfinite(out)))
    print("KERNEL_OK")
</pallas_src>

<mosaic_0001>
module attributes {stable_mosaic.version = 11 : i64} {
  func.func @_sqdist_kernel(%arg0: i32, %arg1: i32, %arg2: memref<1x64x3xf32, #tpu.memory_space<vmem>>, %arg3: memref<1x3x64xf32, #tpu.memory_space<vmem>>, %arg4: memref<1x64x64xf32, #tpu.memory_space<vmem>>) attributes {dimension_semantics = [#tpu.dimension_semantics<parallel>, #tpu.dimension_semantics<parallel>], iteration_bounds = array<i64: 2, 1>, scalar_prefetch = 0 : i64, scratch_operands = 0 : i64, tpu.core_type = #tpu.core_type<tc>, window_params = [{transform_indices = @transform_0, window_bounds = array<i64: 1, 64, 3>}, {transform_indices = @transform_1, window_bounds = array<i64: 1, 3, 64>}, {transform_indices = @transform_2, window_bounds = array<i64: 1, 64, 64>}]} {
    %c0 = arith.constant 0 : index
    %c0_0 = arith.constant 0 : index
    %c0_1 = arith.constant 0 : index
    %0 = vector.load %arg2[%c0, %c0_0, %c0_1] : memref<1x64x3xf32, #tpu.memory_space<vmem>>, vector<1x64x3xf32>
    %1 = vector.shape_cast %0 : vector<1x64x3xf32> to vector<64x3xf32>
    %c0_2 = arith.constant 0 : index
    %c0_3 = arith.constant 0 : index
    %c0_4 = arith.constant 0 : index
    %2 = vector.load %arg3[%c0_2, %c0_3, %c0_4] : memref<1x3x64xf32, #tpu.memory_space<vmem>>, vector<1x3x64xf32>
    %3 = vector.shape_cast %2 : vector<1x3x64xf32> to vector<3x64xf32>
    %4 = vector.extract_strided_slice %1 {offsets = [0, 0], sizes = [64, 1], strides = [1, 1]} : vector<64x3xf32> to vector<64x1xf32>
    %5 = vector.extract_strided_slice %3 {offsets = [0, 0], sizes = [1, 64], strides = [1, 1]} : vector<3x64xf32> to vector<1x64xf32>
    %6 = vector.broadcast %4 : vector<64x1xf32> to vector<64x64xf32>
    %7 = vector.broadcast %5 : vector<1x64xf32> to vector<64x64xf32>
    %8 = arith.mulf %6, %7 : vector<64x64xf32>
    %9 = vector.extract_strided_slice %1 {offsets = [0, 1], sizes = [64, 1], strides = [1, 1]} : vector<64x3xf32> to vector<64x1xf32>
    %10 = vector.extract_strided_slice %3 {offsets = [1, 0], sizes = [1, 64], strides = [1, 1]} : vector<3x64xf32> to vector<1x64xf32>
    %11 = vector.broadcast %9 : vector<64x1xf32> to vector<64x64xf32>
    %12 = vector.broadcast %10 : vector<1x64xf32> to vector<64x64xf32>
    %13 = arith.mulf %11, %12 : vector<64x64xf32>
    %14 = arith.addf %8, %13 : vector<64x64xf32>
    %15 = vector.extract_strided_slice %1 {offsets = [0, 2], sizes = [64, 1], strides = [1, 1]} : vector<64x3xf32> to vector<64x1xf32>
    %16 = vector.extract_strided_slice %3 {offsets = [2, 0], sizes = [1, 64], strides = [1, 1]} : vector<3x64xf32> to vector<1x64xf32>
    %17 = vector.broadcast %15 : vector<64x1xf32> to vector<64x64xf32>
    %18 = vector.broadcast %16 : vector<1x64xf32> to vector<64x64xf32>
    %19 = arith.mulf %17, %18 : vector<64x64xf32>
    %20 = arith.addf %14, %19 : vector<64x64xf32>
    %21 = arith.mulf %1, %1 : vector<64x3xf32>
    %cst = arith.constant dense<0.000000e+00> : vector<64xf32>
    %22 = vector.multi_reduction <add>, %21, %cst [1] : vector<64x3xf32> to vector<64xf32>
    %23 = vector.shape_cast %22 : vector<64xf32> to vector<64x1xf32>
    %24 = arith.mulf %3, %3 : vector<3x64xf32>
    %cst_5 = arith.constant dense<0.000000e+00> : vector<64xf32>
    %25 = vector.multi_reduction <add>, %24, %cst_5 [0] : vector<3x64xf32> to vector<64xf32>
    %26 = vector.shape_cast %25 : vector<64xf32> to vector<1x64xf32>
    %27 = vector.broadcast %23 : vector<64x1xf32> to vector<64x64xf32>
    %28 = vector.broadcast %26 : vector<1x64xf32> to vector<64x64xf32>
    %29 = arith.addf %27, %28 : vector<64x64xf32>
    %cst_6 = arith.constant 2.000000e+00 : f32
    %30 = vector.broadcast %cst_6 : f32 to vector<64x64xf32>
    %31 = arith.mulf %30, %20 : vector<64x64xf32>
    %32 = arith.subf %29, %31 : vector<64x64xf32>
    %cst_7 = arith.constant 0.000000e+00 : f32
    %33 = vector.broadcast %cst_7 : f32 to vector<64x64xf32>
    %34 = arith.maximumf %32, %33 : vector<64x64xf32>
    %c0_8 = arith.constant 0 : index
    %c0_9 = arith.constant 0 : index
    %c0_10 = arith.constant 0 : index
    %35 = vector.load %arg4[%c0_8, %c0_9, %c0_10] : memref<1x64x64xf32, #tpu.memory_space<vmem>>, vector<1x64x64xf32>
    %36 = vector.shape_cast %35 : vector<1x64x64xf32> to vector<64x64xf32>
    %37 = vector.shape_cast %34 : vector<64x64xf32> to vector<1x64x64xf32>
    tpu.vector_store %arg4[%c0_8, %c0_9, %c0_10], %37 {strides = array<i32>} : memref<1x64x64xf32, #tpu.memory_space<vmem>>, vector<1x64x64xf32>,
    return
  }
  func.func @transform_0(%arg0: i32, %arg1: i32) -> (i32, i32, i32) {
    %c0_i32 = arith.constant 0 : i32
    %c0_i32_0 = arith.constant 0 : i32
    return %arg0, %arg1, %c0_i32 : i32, i32, i32
  }
  func.func @transform_1(%arg0: i32, %arg1: i32) -> (i32, i32, i32) {
    %c0_i32 = arith.constant 0 : i32
    %c0_i32_0 = arith.constant 0 : i32
    %c0_i32_1 = arith.constant 0 : i32
    return %arg0, %c0_i32, %c0_i32_0 : i32, i32, i32
  }
  func.func @transform_2(%arg0: i32, %arg1: i32) -> (i32, i32, i32) {
    %c0_i32 = arith.constant 0 : i32
    %c0_i32_0 = arith.constant 0 : i32
    return %arg0, %arg1, %c0_i32 : i32, i32, i32
  }
}

</mosaic_0001>

<llo_original>
// kernel: tpu_custom_call.1
$region0: #{tpu_custom_call.1}
  #allocation0 [shape = 'u32[]', space=smem, size = 0x4, offset = 0x4, fixed_abs, tag = 'smem constant byte address 0x4 - core index']
  #allocation1 [shape = 'u32[144,128]{1,0:T(1,128)}', space=vmem, size = 0x12000, scoped, tag = 'internal scratch']
  %s0 = inlined_call_operand.vmem [shape: f32[2,64,3], index: 0, kind: input, shape index: {}]
  %s1 = inlined_call_operand.vmem [shape: f32[2,3,64], index: 1, kind: input, shape index: {}]
  %s2 = inlined_call_operand.hbm [shape: f32[2,64,64], index: 2, kind: output, shape index: {}]
  %s3 = sld [smem:[#allocation0]]
  $region41: #{tpu_custom_call.1} parent=0
    _
  %s5 = ssub.s32 1, %s3
  %s6 = scalar_select 0, %s5, %s3
  $region1: #{tpu_custom_call.1} parent=0
    #allocation2 [shape = 'u8[65536]{0}', space=vmem, size = 0x10000, scoped, tag = 'output window, operand 0']
    #allocation3 [shape = 's32[2]{0}', space=sflag, size = 0x8, scoped, tag = 'scoped memory for tpu_custom_call.1']
    %7 = vsyncpa [#allocation3], 0
    %s8 = scalar_lea.sflag [#allocation3], 1
    %9 = vsyncpa %s8, 0
    loop: start=0, step=1, limit=4
    $region2: #{tpu_custom_call.1} parent=1 // loop_pre_header
      _
    $region3: #{tpu_custom_call.1} parent=1 // loop_header
      %s11 = sphi 0, %s15
      %p12 = scmp.ge.s32.totalorder %s11, 4
      %s18 = sphi 0, %s30
      %s19 = sphi 0, %s26
      %s20 = sphi 0, %s18
      %s21 = sphi 0, %s19
      %s22 = sphi 0, %s20
      %s23 = sphi 0, %s21
      %s35 = sphi 0, %s37
      %s38 = sphi 0, %s35
      %s39 = sphi 0, %s38
      %s55 = sphi 0, %s39
      %s61 = sphi 0, %s63
      %s64 = sphi 0, %s61
      %s65 = sphi 0, %s64
      %s81 = sphi 0, %s65
      %s89 = sphi 0, %s91
      %s92 = sphi 0, %s89
      %s93 = sphi 0, %s92
      %s109 = sphi 0, %s93
    $region4: #{tpu_custom_call.1} parent=1 // loop_header_branch
      %14 = sbr.rel (%p12) target = $region8
    $region5: #{tpu_custom_call.1} parent=1 // loop_body
      %s16 = ssub.s32 %s11, 1
      %s17 = ssub.s32 %s11, 2
      %s24 = sadd.s32 1, %s19
      %p25 = scmp.ge.s32.totalorder %s24, 1
      %s26 = scalar_select %p25, 0, %s24
      %s27 = sadd.s32 1, %s18
      %s28 = scalar_select %p25, %s27, %s18
      %p29 = scmp.ge.s32.totalorder %s28, 2
      %s30 = scalar_select %p29, 0, %s28
      %s31 = ssub.s32 %s18, %s30
      %s32 = ssub.s32 %s19, %s26
      %s33 = sor.u32 %s31, %s32
      %p34 = scmp.eq.s32.totalorder %s33, 0
      %s36 = sadd.s32 %s35, 1
      %s37 = scalar_select %p34, %s35, %s36
      %p40 = pneg %p34
      %p41 = scmp.eq.s32.totalorder %s11, 1
      %p42 = por %p40, %p41
      %p43 = scmp.ne.s32.totalorder %s35, %s38
      %p44 = scmp.eq.s32.totalorder %s11, 0
      %p45 = por %p43, %p44
      %p46 = scmp.ne.s32.totalorder %s35, %s38
      %p47 = scmp.eq.s32.totalorder %s16, 1
      %p48 = por %p46, %p47
      %p49 = scmp.ne.s32.totalorder %s38, %s39
      %p50 = scmp.eq.s32.totalorder %s16, 0
      %p51 = por %p49, %p50
      %p52 = scmp.ne.s32.totalorder %s38, %s39
      %p53 = scmp.eq.s32.totalorder %s17, 1
      %p54 = por %p52, %p53
      %p56 = scmp.ne.s32.totalorder %s39, %s55
      %p57 = scmp.eq.s32.totalorder %s17, 0
      %p58 = por %p56, %p57
      %s59 = ssub.s32 %s18, %s30
      %p60 = scmp.eq.s32.totalorder %s59, 0
      %s62 = sadd.s32 %s61, 1
      %s63 = scalar_select %p60, %s61, %s62
      %p66 = pneg %p60
      %p67 = scmp.eq.s32.totalorder %s11, 1
      %p68 = por %p66, %p67
      %p69 = scmp.ne.s32.totalorder %s61, %s64
      %p70 = scmp.eq.s32.totalorder %s11, 0
      %p71 = por %p69, %p70
      %p72 = scmp.ne.s32.totalorder %s61, %s64
      %p73 = scmp.eq.s32.totalorder %s16, 1
      %p74 = por %p72, %p73
      %p75 = scmp.ne.s32.totalorder %s64, %s65
      %p76 = scmp.eq.s32.totalorder %s16, 0
      %p77 = por %p75, %p76
      %p78 = scmp.ne.s32.totalorder %s64, %s65
      %p79 = scmp.eq.s32.totalorder %s17, 1
      %p80 = por %p78, %p79
      %p82 = scmp.ne.s32.totalorder %s65, %s81
      %p83 = scmp.eq.s32.totalorder %s17, 0
      %p84 = por %p82, %p83
      %s85 = ssub.s32 %s18, %s30
      %s86 = ssub.s32 %s19, %s26
      %s87 = sor.u32 %s85, %s86
      %p88 = scmp.eq.s32.totalorder %s87, 0
      %s90 = sadd.s32 %s89, 1
      %s91 = scalar_select %p88, %s89, %s90
      %p94 = pneg %p88
      %p95 = scmp.eq.s32.totalorder %s11, 1
      %p96 = por %p94, %p95
      %p97 = scmp.ne.s32.totalorder %s89, %s92
      %p98 = scmp.eq.s32.totalorder %s11, 0
      %p99 = por %p97, %p98
      %p100 = scmp.ne.s32.totalorder %s89, %s92
      %p101 = scmp.eq.s32.totalorder %s16, 1
      %p102 = por %p100, %p101
      %p103 = scmp.ne.s32.totalorder %s92, %s93
      %p104 = scmp.eq.s32.totalorder %s16, 0
      %p105 = por %p103, %p104
      %p106 = scmp.ne.s32.totalorder %s92, %s93
      %p107 = scmp.eq.s32.totalorder %s17, 1
      %p108 = por %p106, %p107
      %p110 = scmp.ne.s32.totalorder %s93, %s109
      %p111 = scmp.eq.s32.totalorder %s17, 0
      %p112 = por %p110, %p111
      %p113 = scmp.le.s32.totalorder 1, %s11
      %p114 = scmp.lt.s32.totalorder %s11, 3
      %p115 = pnand %p113, %p114
      %p116 = pneg %p115
      // Predicated region
      $region9: #{tpu_custom_call.1} parent=5 // pred_check
        _
      $region10: #{tpu_custom_call.1} parent=5 // pred_check_branch
        %118 = sbr.rel (%p115) target = $region12
      $region11: #{tpu_custom_call.1} parent=5 // pred_region
        %s119 = ssub.s32 %s11, 1
      $region12: #{tpu_custom_call.1} parent=5 // pred_fallthru
        _
      %p120 = scmp.lt.s32.totalorder %s11, 2
      // Predicated region
      $region13: #{tpu_custom_call.1} parent=5 // pred_check
        %p121 = pneg %p120
      $region14: #{tpu_custom_call.1} parent=5 // pred_check_branch
        %123 = sbr.rel (%p121) target = $region16
      $region15: #{tpu_custom_call.1} parent=5 // pred_region
        // Predicated region
        $region17: #{tpu_custom_call.1} parent=15 // pred_check
          %p124 = pneg %p45
        $region18: #{tpu_custom_call.1} parent=15 // pred_check_branch
          %126 = sbr.rel (%p124) target = $region20
        $region19: #{tpu_custom_call.1} parent=15 // pred_region
          %s127 = smul.u32 8, %s19
          %p128 = scmp.lt.s32.totalorder %s18, 1
          %s129 = scalar_select %p128, %s18, 1
          %p130 = scmp.lt.s32.totalorder %s127, 7
          %s131 = scalar_select %p130, %s127, 7
          %s132 = smul.addr %s129, 8
          %s133 = sadd.s32 %s131, %s132
          %s134 = smul.addr %s133, 8
          %s135 = scalar_lea.vmem %s0, %s134
          %s136 = smul.u32 8, %s19
        $region20: #{tpu_custom_call.1} parent=15 // pred_fallthru
          _
        // Predicated region
        $region21: #{tpu_custom_call.1} parent=15 // pred_check
          %p137 = pneg %p71
        $region22: #{tpu_custom_call.1} parent=15 // pred_check_branch
          %139 = sbr.rel (%p137) target = $region24
        $region23: #{tpu_custom_call.1} parent=15 // pred_region
          %p140 = scmp.lt.s32.totalorder %s18, 1
          %s141 = scalar_select %p140, %s18, 1
          %s142 = smul.addr %s141, 4
          %s143 = scalar_lea.vmem %s1, %s142
        $region24: #{tpu_custom_call.1} parent=15 // pred_fallthru
          _
      $region16: #{tpu_custom_call.1} parent=5 // pred_fallthru
        _
      %p144 = scmp.le.s32.totalorder 1, %s11
      %p145 = scmp.lt.s32.totalorder %s11, 3
      %p146 = pnand %p144, %p145
      %p147 = pneg %p146
      // Predicated region
      $region25: #{tpu_custom_call.1} parent=5 // pred_check
        _
      $region26: #{tpu_custom_call.1} parent=5 // pred_check_branch
        %149 = sbr.rel (%p146) target = $region28
      $region27: #{tpu_custom_call.1} parent=5 // pred_region
        %s150 = ssub.s32 %s11, 1
        %s151 = smul.u32 8, %s21
        %p152 = scmp.lt.s32.totalorder %s20, 1
        %s153 = scalar_select %p152, %s20, 1
        %p154 = scmp.lt.s32.totalorder %s151, 7
        %s155 = scalar_select %p154, %s151, 7
        %s156 = smul.addr %s153, 8
        %s157 = sadd.s32 %s155, %s156
        %s158 = smul.addr %s157, 8
        %s159 = scalar_lea.vmem %s0, %s158
        %p160 = pneg %p51
        %p161 = pneg %p48
        %p162 = scmp.lt.s32.totalorder %s20, 1
        %s163 = scalar_select %p162, %s20, 1
        %s164 = smul.addr %s163, 4
        %s165 = scalar_lea.vmem %s1, %s164
        %p166 = pneg %p77
        %p167 = pneg %p74
        %p168 = pneg %p105
        %p169 = pneg %p102
        %s170 = sand.u32 %s92, 1
        %s171 = scalar_lea.sflag [#allocation3], %s170
        %s172 = sand.u32 %s92, 1
        %s173 = smul.addr %s172, 64
        %s174 = scalar_lea.vmem [#allocation2], %s173
        %s175 = smul.u32 8, %s21
        %p176 = scmp.lt.s32.totalorder %s20, 1
        %s177 = scalar_select %p176, %s20, 1
        %p178 = scmp.lt.s32.totalorder %s175, 7
        %s179 = scalar_select %p178, %s175, 7
        %s180 = smul.addr %s177, 8
        %s181 = sadd.s32 %s179, %s180
        %s182 = smul.addr %s181, 8
        %s183 = scalar_lea.vmem %s0, %s182
        %s184 = smul.u32 8, %s21
        %p185 = scmp.lt.s32.totalorder %s20, 1
        %s186 = scalar_select %p185, %s20, 1
        %s187 = smul.addr %s186, 4
        %s188 = scalar_lea.vmem %s1, %s187
        %s189 = smul.u32 8, %s21
        %v190 = vld [vmem:[%s183] sm:$0xff]
        %v191 = vld [vmem:[%s183 + $0x8] sm:$0xff]
        %v192 = vld [vmem:[%s183 + $0x10] sm:$0xff]
        %v193 = vld [vmem:[%s183 + $0x18] sm:$0xff]
        %v194 = vld [vmem:[%s183 + $0x20] sm:$0xff]
        %v195 = vld [vmem:[%s183 + $0x28] sm:$0xff]
        %v196 = vld [vmem:[%s183 + $0x30] sm:$0xff]
        %v197 = vld [vmem:[%s183 + $0x38] sm:$0xff]
        %v198 = vld [vmem:[%s188] sm:$0x7]
        %200 = vset.pattern.permute.xlu0 0
        %201 = vperm.xlu0 %200, %v190
        %v202 = vpop.permute.xlu0 %201
        %205 = vset.pattern.permute.xlu0 0
        %206 = vperm.xlu0 %205, %v191
        %v207 = vpop.permute.xlu0 %206
        %210 = vset.pattern.permute.xlu0 0
        %211 = vperm.xlu0 %210, %v192
        %v212 = vpop.permute.xlu0 %211
        %215 = vset.pattern.permute.xlu0 0
        %216 = vperm.xlu0 %215, %v193
        %v217 = vpop.permute.xlu0 %216
        %220 = vset.pattern.permute.xlu0 0
        %221 = vperm.xlu0 %220, %v194
        %v222 = vpop.permute.xlu0 %221
        %225 = vset.pattern.permute.xlu0 0
        %226 = vperm.xlu0 %225, %v195
        %v227 = vpop.permute.xlu0 %226
        %230 = vset.pattern.permute.xlu0 0
        %231 = vperm.xlu0 %230, %v196
        %v232 = vpop.permute.xlu0 %231
        %235 = vset.pattern.permute.xlu0 0
        %236 = vperm.xlu0 %235, %v197
        %v237 = vpop.permute.xlu0 %236
        %v239 = vlaneseq
        %v240 = vshrl.u32 %v239, 7
        %v241 = vsub.s32 0, %v240
        %v242 = vrot.slane %v198, %v241
        %v243 = vmul.f32 %v202, %v242
        %v244 = vmul.f32 %v207, %v242
        %v245 = vmul.f32 %v212, %v242
        %v246 = vmul.f32 %v217, %v242
        %v247 = vmul.f32 %v222, %v242
        %v248 = vmul.f32 %v227, %v242
        %v249 = vmul.f32 %v232, %v242
        %v250 = vmul.f32 %v237, %v242
        %251 = vset.pattern.permute.xlu0 1
        %252 = vperm.xlu0 %251, %v190
        %v253 = vpop.permute.xlu0 %252
        %255 = vset.pattern.permute.xlu0 1
        %256 = vperm.xlu0 %255, %v191
        %v257 = vpop.permute.xlu0 %256
        %259 = vset.pattern.permute.xlu0 1
        %260 = vperm.xlu0 %259, %v192
        %v261 = vpop.permute.xlu0 %260
        %263 = vset.pattern.permute.xlu0 1
        %264 = vperm.xlu0 %263, %v193
        %v265 = vpop.permute.xlu0 %264
        %267 = vset.pattern.permute.xlu0 1
        %268 = vperm.xlu0 %267, %v194
        %v269 = vpop.permute.xlu0 %268
        %271 = vset.pattern.permute.xlu0 1
        %272 = vperm.xlu0 %271, %v195
        %v273 = vpop.permute.xlu0 %272
        %275 = vset.pattern.permute.xlu0 1
        %276 = vperm.xlu0 %275, %v196
        %v277 = vpop.permute.xlu0 %276
        %279 = vset.pattern.permute.xlu0 1
        %280 = vperm.xlu0 %279, %v197
        %v281 = vpop.permute.xlu0 %280
        %v283 = vlaneseq
        %v284 = vshrl.u32 %v283, 7
        %v285 = vsub.s32 1, %v284
        %v286 = vrot.slane %v198, %v285
        %v287 = vmul.f32 %v253, %v286
        %v288 = vmul.f32 %v257, %v286
        %v289 = vmul.f32 %v261, %v286
        %v290 = vmul.f32 %v265, %v286
        %v291 = vmul.f32 %v269, %v286
        %v292 = vmul.f32 %v273, %v286
        %v293 = vmul.f32 %v277, %v286
        %v294 = vmul.f32 %v281, %v286
        %v295 = vadd.f32 %v243, %v287
        %v296 = vadd.f32 %v244, %v288
        %v297 = vadd.f32 %v245, %v289
        %v298 = vadd.f32 %v246, %v290
        %v299 = vadd.f32 %v247, %v291
        %v300 = vadd.f32 %v248, %v292
        %v301 = vadd.f32 %v249, %v293
        %v302 = vadd.f32 %v250, %v294
        %303 = vset.pattern.permute.xlu0 2
        %304 = vperm.xlu0 %303, %v190
        %v305 = vpop.permute.xlu0 %304
        %307 = vset.pattern.permute.xlu0 2
        %308 = vperm.xlu0 %307, %v191
        %v309 = vpop.permute.xlu0 %308
        %311 = vset.pattern.permute.xlu0 2
        %312 = vperm.xlu0 %311, %v192
        %v313 = vpop.permute.xlu0 %312
        %315 = vset.pattern.permute.xlu0 2
        %316 = vperm.xlu0 %315, %v193
        %v317 = vpop.permute.xlu0 %316
        %319 = vset.pattern.permute.xlu0 2
        %320 = vperm.xlu0 %319, %v194
        %v321 = vpop.permute.xlu0 %320
        %323 = vset.pattern.permute.xlu0 2
        %324 = vperm.xlu0 %323, %v195
        %v325 = vpop.permute.xlu0 %324
        %327 = vset.pattern.permute.xlu0 2
        %328 = vperm.xlu0 %327, %v196
        %v329 = vpop.permute.xlu0 %328
        %331 = vset.pattern.permute.xlu0 2
        %332 = vperm.xlu0 %331, %v197
        %v333 = vpop.permute.xlu0 %332
        %v335 = vlaneseq
        %v336 = vshrl.u32 %v335, 7
        %v337 = vsub.s32 2, %v336
        %v338 = vrot.slane %v198, %v337
        %v339 = vmul.f32 %v305, %v338
        %v340 = vmul.f32 %v309, %v338
        %v341 = vmul.f32 %v313, %v338
        %v342 = vmul.f32 %v317, %v338
        %v343 = vmul.f32 %v321, %v338
        %v344 = vmul.f32 %v325, %v338
        %v345 = vmul.f32 %v329, %v338
        %v346 = vmul.f32 %v333, %v338
        %v347 = vadd.f32 %v295, %v339
        %v348 = vadd.f32 %v296, %v340
        %v349 = vadd.f32 %v297, %v341
        %v350 = vadd.f32 %v298, %v342
        %v351 = vadd.f32 %v299, %v343
        %v352 = vadd.f32 %v300, %v344
        %v353 = vadd.f32 %v301, %v345
        %v354 = vadd.f32 %v302, %v346
        %v355 = vmul.f32 %v190, %v190
        %v356 = vmul.f32 %v191, %v191
        %v357 = vmul.f32 %v192, %v192
        %v358 = vmul.f32 %v193, %v193
        %v359 = vmul.f32 %v194, %v194
        %v360 = vmul.f32 %v195, %v195
        %v361 = vmul.f32 %v196, %v196
        %v362 = vmul.f32 %v197, %v197
        %vm363 = vcmask 23552
        %v364 = vsel %vm363, %v355, 0.0
        %365 = vadd.xlane.f32.xlu0 %v364
        %v366 = vpop.xlane.xlu0 %365
        %v367 = vsel %vm363, %v356, 0.0
        %368 = vadd.xlane.f32.xlu0 %v367
        %v369 = vpop.xlane.xlu0 %368
        %v370 = vsel %vm363, %v357, 0.0
        %371 = vadd.xlane.f32.xlu0 %v370
        %v372 = vpop.xlane.xlu0 %371
        %v373 = vsel %vm363, %v358, 0.0
        %374 = vadd.xlane.f32.xlu0 %v373
        %v375 = vpop.xlane.xlu0 %374
        %v376 = vsel %vm363, %v359, 0.0
        %377 = vadd.xlane.f32.xlu0 %v376
        %v378 = vpop.xlane.xlu0 %377
        %v379 = vsel %vm363, %v360, 0.0
        %380 = vadd.xlane.f32.xlu0 %v379
        %v381 = vpop.xlane.xlu0 %380
        %v382 = vsel %vm363, %v361, 0.0
        %383 = vadd.xlane.f32.xlu0 %v382
        %v384 = vpop.xlane.xlu0 %383
        %v385 = vsel %vm363, %v362, 0.0
        %386 = vadd.xlane.f32.xlu0 %v385
        %v387 = vpop.xlane.xlu0 %386
        %v388 = vmul.f32 %v198, %v198
        %vm389 = vcmask 518144
        %v390 = vsel %vm389, %v388, 0.0
        %v391 = vrot.slane %v390, 4
        %v392 = vadd.f32 %v390, %v391
        %v393 = vrot.slane %v392, 2
        %v394 = vadd.f32 %v392, %v393
        %v395 = vrot.slane %v394, 1
        %v396 = vadd.f32 %v394, %v395
        %v397 = vadd.f32 %v366, %v396
        %v398 = vadd.f32 %v369, %v396
        %v399 = vadd.f32 %v372, %v396
        %v400 = vadd.f32 %v375, %v396
        %v401 = vadd.f32 %v378, %v396
        %v402 = vadd.f32 %v381, %v396
        %v403 = vadd.f32 %v384, %v396
        %v404 = vadd.f32 %v387, %v396
        %v405 = vmul.f32 %v347, 2.0
        %v406 = vmul.f32 %v348, 2.0
        %v407 = vmul.f32 %v349, 2.0
        %v408 = vmul.f32 %v350, 2.0
        %v409 = vmul.f32 %v351, 2.0
        %v410 = vmul.f32 %v352, 2.0
        %v411 = vmul.f32 %v353, 2.0
        %v412 = vmul.f32 %v354, 2.0
        %v413 = vsub.f32 %v397, %v405
        %v414 = vsub.f32 %v398, %v406
        %v415 = vsub.f32 %v399, %v407
        %v416 = vsub.f32 %v400, %v408
        %v417 = vsub.f32 %v401, %v409
        %v418 = vsub.f32 %v402, %v410
        %v419 = vsub.f32 %v403, %v411
        %v420 = vsub.f32 %v404, %v412
        %v421 = vmax.f32 %v413, 0.0
        %v422 = vmax.f32 %v414, 0.0
        %v423 = vmax.f32 %v415, 0.0
        %v424 = vmax.f32 %v416, 0.0
        %v425 = vmax.f32 %v417, 0.0
        %v426 = vmax.f32 %v418, 0.0
        %v427 = vmax.f32 %v419, 0.0
        %v428 = vmax.f32 %v420, 0.0
        %vm429 = vcmask 523264
        %430 = vst.msk [vmem:[%s174] sm:$0xff] %vm429, %v421
        %431 = vst.msk [vmem:[%s174 + $0x8] sm:$0xff] %vm429, %v422
        %432 = vst.msk [vmem:[%s174 + $0x10] sm:$0xff] %vm429, %v423
        %433 = vst.msk [vmem:[%s174 + $0x18] sm:$0xff] %vm429, %v424
        %434 = vst.msk [vmem:[%s174 + $0x20] sm:$0xff] %vm429, %v425
        %435 = vst.msk [vmem:[%s174 + $0x28] sm:$0xff] %vm429, %v426
        %436 = vst.msk [vmem:[%s174 + $0x30] sm:$0xff] %vm429, %v427
        %437 = vst.msk [vmem:[%s174 + $0x38] sm:$0xff] %vm429, %v428
        %s438 = sand.u32 %s92, 1
        %s439 = scalar_lea.sflag [#allocation3], %s438
        %s440 = sand.u32 %s92, 1
        %s441 = smul.addr %s440, 64
        %s442 = scalar_lea.vmem [#allocation2], %s441
        // Predicated region
        $region29: #{tpu_custom_call.1} parent=27 // pred_check
          %p443 = pneg %p102
        $region30: #{tpu_custom_call.1} parent=27 // pred_check_branch
          %445 = sbr.rel (%p443) target = $region32
        $region31: #{tpu_custom_call.1} parent=27 // pred_region
          %s446 = smul.u32 8, %s21
          %s448 = ssub.s32 1024, 1024
          %449 = vsyncadd %s439, %s448
          %s450 = smul.addr %s20, 8
          %s451 = sadd.s32 %s446, %s450
          %s452 = smul.addr %s451, 128
          %s453 = scalar_lea.hbm %s2, %s452
          %s454 = sshll.u32 %s442, 4
          %s455 = int_to_ptr.vmem [resolvable:$true] %s454
          %460 = dma.vmem_to_hbm [thread:$0]  %s455, 1024, %s453, %s439, 128, 128, 8
        $region32: #{tpu_custom_call.1} parent=27 // pred_fallthru
          _
      $region28: #{tpu_custom_call.1} parent=5 // pred_fallthru
        _
      %p461 = scmp.le.s32.totalorder 2, %s11
      // Predicated region
      $region33: #{tpu_custom_call.1} parent=5 // pred_check
        %p462 = pneg %p461
      $region34: #{tpu_custom_call.1} parent=5 // pred_check_branch
        %464 = sbr.rel (%p462) target = $region36
      $region35: #{tpu_custom_call.1} parent=5 // pred_region
        %s465 = ssub.s32 %s11, 2
        // Predicated region
        $region37: #{tpu_custom_call.1} parent=35 // pred_check
          %p466 = pneg %p108
        $region38: #{tpu_custom_call.1} parent=35 // pred_check_branch
          %468 = sbr.rel (%p466) target = $region40
        $region39: #{tpu_custom_call.1} parent=35 // pred_region
          %s469 = sand.u32 %s93, 1
          %s470 = scalar_lea.sflag [#allocation3], %s469
          %s471 = sand.u32 %s93, 1
          %s472 = smul.addr %s471, 64
          %s473 = scalar_lea.vmem [#allocation2], %s472
          %474 = dma.done %s470, 1024
        $region40: #{tpu_custom_call.1} parent=35 // pred_fallthru
          _
      $region36: #{tpu_custom_call.1} parent=5 // pred_fallthru
        _
    $region6: #{tpu_custom_call.1} parent=1 // loop_footer
      %s15 = sadd.s32 1, %s11
    $region7: #{tpu_custom_call.1} parent=1 // loop_footer_branch
      %10 = sbr.rel target = $region3
    $region8: #{tpu_custom_call.1} parent=1 // loop_exit
      _
    %475 = vsyncpa [#allocation3], 1
    %s476 = scalar_lea.sflag [#allocation3], 1
    %477 = vsyncpa %s476, 1

</llo_original>
